<compile_context>
chip_gen: v7x
topology: tpu7x:2x2x1
jax: 0.10.0
libtpu: 0.0.40
codegen_flags: <defaults>
</compile_context>

<pallas_src>
import jax
import jax.numpy as jnp
from jax.experimental import pallas as pl
from jax.experimental.pallas import tpu as pltpu

IN_FEATURES = 25
HIDDEN = 64
OUT_FEATURES = 1


def mlp_kernel(x_ref, w1t_ref, b1_ref, w2_ref, b2_ref, out_ref):
    # x_ref  : (TB, 25)  f32   streamed block, natural PyTorch layout
    # w1t_ref: (64, 25)  bf16  VMEM-resident (fc1 weight, transposed)
    # b1_ref : (64, 1)   f32   VMEM-resident
    # w2_ref : (64, 1)   f32   VMEM-resident
    # b2_ref : (1, 1)    f32   VMEM-resident
    # out_ref: (1, TB)   f32   lane-dense output block (batch on the lane axis)
    x = x_ref[...]                                              # (TB, K) f32
    # Sublane->lane transpose (XLU; hidden under the DMA in this memory-bound kernel),
    # then bf16 cast for the MXU operands.
    xt = jnp.transpose(x, (1, 0)).astype(jnp.bfloat16)          # (K, TB) bf16

    # fc1 on the MXU: bf16 operands, f32 accumulation; batch stays on the lane axis.
    h = jnp.dot(w1t_ref[...], xt,
                preferred_element_type=jnp.float32)             # (64, TB) f32
    h = jnp.maximum(h + b1_ref[...], 0.0)                       # bias + ReLU (f32 VPU)

    # fc2 as VPU broadcast-multiply + sublane reduction over the 64 hidden rows
    # (keeps the tiny M=1 second layer off the MXU).
    z = jnp.sum(h * w2_ref[...], axis=0, keepdims=True) + b2_ref[...]   # (1, TB) f32

    # Exact sigmoid: exp on the EUP; exp(-z) -> inf for very negative z gives 0 exactly.
    out_ref[...] = 1.0 / (1.0 + jnp.exp(-z))


def slmp_forward(x, w1, b1, w2, b2, *, tile_b=8192):
    """x: (B, 25) f32; w1: (25, 64); b1: (1, 64); w2: (64, 1); b2: (1, 1) -> (B, 1)."""
    B = x.shape[0]
    assert x.shape[1] == IN_FEATURES

    # Lane-aligned batch tile: at most tile_b, and at most ~half the rounded-up batch
    # so medium/large batches get >= 2 grid steps (v7x megacore).
    tb = min(tile_b, max(128, pl.cdiv(B, 2 * 128) * 128))

    # Only tiny batches get padded (so a single block never exceeds the array);
    # large batches rely on Pallas masking the ragged last block.
    if B < tb:
        x = jnp.pad(x, ((0, tb - B), (0, 0)))
    B_eff = x.shape[0]
    grid = (pl.cdiv(B_eff, tb),)

    # Weight-side plumbing: tiny arrays, one-time cast/reshape, VMEM-resident in-kernel.
    w1t = w1.T.astype(jnp.bfloat16)                      # (64, 25)
    b1c = b1.reshape(HIDDEN, 1).astype(jnp.float32)      # (64, 1)
    w2c = w2.reshape(HIDDEN, 1).astype(jnp.float32)      # (64, 1)
    b2c = b2.reshape(1, 1).astype(jnp.float32)           # (1, 1)

    resident = pl.BlockSpec(memory_space=pltpu.MemorySpace.VMEM)

    out_t = pl.pallas_call(
        mlp_kernel,
        out_shape=jax.ShapeDtypeStruct((1, B_eff), jnp.float32),
        grid=grid,
        in_specs=[
            pl.BlockSpec((tb, IN_FEATURES), lambda i: (i, 0)),   # x streams (pipelined)
            resident,   # w1t
            resident,   # b1
            resident,   # w2
            resident,   # b2
        ],
        out_specs=pl.BlockSpec((1, tb), lambda i: (0, i)),        # lane-dense output
        compiler_params=pltpu.CompilerParams(
            dimension_semantics=("parallel",),
            vmem_limit_bytes=32 * 1024 * 1024,
        ),
    )(x, w1t, b1c, w2c, b2c)

    # Back to PyTorch layout (B, 1); drop any tiny-batch padding.
    return out_t[0, :B][:, None]


def init_params(key):
    """Deterministic init mimicking nn.Linear: U(-1/sqrt(fan_in), 1/sqrt(fan_in))."""
    k1, k2, k3, k4 = jax.random.split(key, 4)
    bound1 = 1.0 / jnp.sqrt(IN_FEATURES)
    bound2 = 1.0 / jnp.sqrt(HIDDEN)
    # stored as (in, out) so the math reads x @ W; the wrapper transposes for the kernel
    w1 = jax.random.uniform(k1, (IN_FEATURES, HIDDEN), jnp.float32, -bound1, bound1)
    b1 = jax.random.uniform(k2, (1, HIDDEN), jnp.float32, -bound1, bound1)
    w2 = jax.random.uniform(k3, (HIDDEN, OUT_FEATURES), jnp.float32, -bound2, bound2)
    b2 = jax.random.uniform(k4, (1, OUT_FEATURES), jnp.float32, -bound2, bound2)
    return w1, b1, w2, b2


def reference_forward_f32(x, w1, b1, w2, b2):
    h = jnp.maximum(x @ w1 + b1, 0.0)
    return jax.nn.sigmoid(h @ w2 + b2)


def reference_forward_bf16path(x, w1, b1, w2, b2):
    # Same precision recipe as the kernel: bf16 fc1 operands with f32 accumulation,
    # fc2 + epilogue entirely in f32.
    h = jnp.dot(x.astype(jnp.bfloat16), w1.astype(jnp.bfloat16),
                preferred_element_type=jnp.float32) + b1
    h = jnp.maximum(h, 0.0)
    z = jnp.dot(h, w2, preferred_element_type=jnp.float32) + b2
    return 1.0 / (1.0 + jnp.exp(-z))


if __name__ == "__main__":
    key = jax.random.PRNGKey(0)
    kx, kx2, kp = jax.random.split(key, 3)
    w1, b1, w2, b2 = init_params(kp)

    fwd = jax.jit(slmp_forward)

    # Small batch (single padded-tile path).
    batch = 16
    x = jax.random.normal(kx, (batch, IN_FEATURES), jnp.float32)
    out = jax.block_until_ready(fwd(x, w1, b1, w2, b2))
    assert out.shape == (batch, OUT_FEATURES)
    assert jnp.allclose(out, reference_forward_bf16path(x, w1, b1, w2, b2),
                        atol=2e-3, rtol=2e-3), "kernel deviates from same-precision ref"
    assert jnp.allclose(out, reference_forward_f32(x, w1, b1, w2, b2),
                        atol=2e-2, rtol=2e-2), "kernel deviates from f32 ref"

    # Slightly larger batch: exercises a multi-step grid + ragged (masked) last block.
    batch2 = 300
    x2 = jax.random.normal(kx2, (batch2, IN_FEATURES), jnp.float32)
    out2 = jax.block_until_ready(fwd(x2, w1, b1, w2, b2))
    assert out2.shape == (batch2, OUT_FEATURES)
    assert jnp.allclose(out2, reference_forward_bf16path(x2, w1, b1, w2, b2),
                        atol=2e-3, rtol=2e-3), "kernel deviates from same-precision ref"
    assert jnp.allclose(out2, reference_forward_f32(x2, w1, b1, w2, b2),
                        atol=2e-2, rtol=2e-2), "kernel deviates from f32 ref"

    print("KERNEL_OK")
</pallas_src>

<mosaic_0001>
module attributes {stable_mosaic.version = 11 : i64} {
  func.func @mlp_kernel(%arg0: i32, %arg1: memref<128x25xf32, #tpu.memory_space<vmem>>, %arg2: memref<64x25xbf16, #tpu.memory_space<vmem>>, %arg3: memref<64x1xf32, #tpu.memory_space<vmem>>, %arg4: memref<64x1xf32, #tpu.memory_space<vmem>>, %arg5: memref<1x1xf32, #tpu.memory_space<vmem>>, %arg6: memref<1x128xf32, #tpu.memory_space<vmem>>) attributes {dimension_semantics = [#tpu.dimension_semantics<parallel>], iteration_bounds = array<i64: 1>, scalar_prefetch = 0 : i64, scratch_operands = 0 : i64, tpu.core_type = #tpu.core_type<tc>, window_params = [{transform_indices = @transform_0, window_bounds = array<i64: 128, 25>}, {pipeline_mode = #tpu.pipeline_mode<synchronous>, transform_indices = @transform_1, window_bounds = array<i64: 64, 25>}, {pipeline_mode = #tpu.pipeline_mode<synchronous>, transform_indices = @transform_2, window_bounds = array<i64: 64, 1>}, {pipeline_mode = #tpu.pipeline_mode<synchronous>, transform_indices = @transform_3, window_bounds = array<i64: 64, 1>}, {pipeline_mode = #tpu.pipeline_mode<synchronous>, transform_indices = @transform_4, window_bounds = array<i64: 1, 1>}, {transform_indices = @transform_5, window_bounds = array<i64: 1, 128>}]} {
    %c0 = arith.constant 0 : index
    %c0_0 = arith.constant 0 : index
    %0 = vector.load %arg1[%c0, %c0_0] : memref<128x25xf32, #tpu.memory_space<vmem>>, vector<128x25xf32>
    %1 = tpu.transpose %0, [1, 0] : vector<128x25xf32> -> vector<25x128xf32>
    %2 = arith.truncf %1 : vector<25x128xf32> to vector<25x128xbf16>
    %c0_1 = arith.constant 0 : index
    %c0_2 = arith.constant 0 : index
    %3 = vector.load %arg2[%c0_1, %c0_2] : memref<64x25xbf16, #tpu.memory_space<vmem>>, vector<64x25xbf16>
    %cst = arith.constant dense<0.000000e+00> : vector<64x128xf32>
    %4 = tpu.matmul %3, %2, %cst {dimension_numbers = #tpu.dot_dimension_numbers<[1], [0], [0], [1], [0, 0, 1, 1], [], []>} : vector<64x25xbf16>, vector<25x128xbf16>, vector<64x128xf32> -> vector<64x128xf32>
    %c0_3 = arith.constant 0 : index
    %c0_4 = arith.constant 0 : index
    %5 = vector.load %arg3[%c0_3, %c0_4] : memref<64x1xf32, #tpu.memory_space<vmem>>, vector<64x1xf32>
    %6 = vector.broadcast %5 : vector<64x1xf32> to vector<64x128xf32>
    %7 = arith.addf %4, %6 : vector<64x128xf32>
    %cst_5 = arith.constant 0.000000e+00 : f32
    %8 = vector.broadcast %cst_5 : f32 to vector<64x128xf32>
    %9 = arith.maximumf %7, %8 : vector<64x128xf32>
    %c0_6 = arith.constant 0 : index
    %c0_7 = arith.constant 0 : index
    %10 = vector.load %arg4[%c0_6, %c0_7] : memref<64x1xf32, #tpu.memory_space<vmem>>, vector<64x1xf32>
    %11 = vector.broadcast %10 : vector<64x1xf32> to vector<64x128xf32>
    %12 = arith.mulf %9, %11 : vector<64x128xf32>
    %cst_8 = arith.constant dense<0.000000e+00> : vector<128xf32>
    %13 = vector.multi_reduction <add>, %12, %cst_8 [0] : vector<64x128xf32> to vector<128xf32>
    %14 = vector.shape_cast %13 : vector<128xf32> to vector<1x128xf32>
    %c0_9 = arith.constant 0 : index
    %c0_10 = arith.constant 0 : index
    %15 = vector.load %arg5[%c0_9, %c0_10] : memref<1x1xf32, #tpu.memory_space<vmem>>, vector<1x1xf32>
    %16 = vector.broadcast %15 : vector<1x1xf32> to vector<1x128xf32>
    %17 = arith.addf %14, %16 : vector<1x128xf32>
    %cst_11 = arith.constant 0.000000e+00 : f32
    %18 = vector.broadcast %cst_11 : f32 to vector<1x128xf32>
    %19 = arith.subf %18, %17 : vector<1x128xf32>
    %20 = math.exp %19 : vector<1x128xf32>
    %cst_12 = arith.constant 1.000000e+00 : f32
    %21 = vector.broadcast %cst_12 : f32 to vector<1x128xf32>
    %22 = arith.addf %21, %20 : vector<1x128xf32>
    %cst_13 = arith.constant 1.000000e+00 : f32
    %23 = vector.broadcast %cst_13 : f32 to vector<1x128xf32>
    %24 = arith.divf %23, %22 : vector<1x128xf32>
    %c0_14 = arith.constant 0 : index
    %c0_15 = arith.constant 0 : index
    %25 = vector.load %arg6[%c0_14, %c0_15] : memref<1x128xf32, #tpu.memory_space<vmem>>, vector<1x128xf32>
    tpu.vector_store %arg6[%c0_14, %c0_15], %24 {strides = array<i32>} : memref<1x128xf32, #tpu.memory_space<vmem>>, vector<1x128xf32>,
    return
  }
  func.func @transform_0(%arg0: i32) -> (i32, i32) {
    %c0_i32 = arith.constant 0 : i32
    %c0_i32_0 = arith.constant 0 : i32
    return %arg0, %c0_i32 : i32, i32
  }
  func.func @transform_1(%arg0: i32) -> (i32, i32) {
    %c0_i32 = arith.constant 0 : i32
    %c0_i32_0 = arith.constant 0 : i32
    %c0_i32_1 = arith.constant 0 : i32
    return %c0_i32, %c0_i32_0 : i32, i32
  }
  func.func @transform_2(%arg0: i32) -> (i32, i32) {
    %c0_i32 = arith.constant 0 : i32
    %c0_i32_0 = arith.constant 0 : i32
    %c0_i32_1 = arith.constant 0 : i32
    return %c0_i32, %c0_i32_0 : i32, i32
  }
  func.func @transform_3(%arg0: i32) -> (i32, i32) {
    %c0_i32 = arith.constant 0 : i32
    %c0_i32_0 = arith.constant 0 : i32
    %c0_i32_1 = arith.constant 0 : i32
    return %c0_i32, %c0_i32_0 : i32, i32
  }
  func.func @transform_4(%arg0: i32) -> (i32, i32) {
    %c0_i32 = arith.constant 0 : i32
    %c0_i32_0 = arith.constant 0 : i32
    %c0_i32_1 = arith.constant 0 : i32
    return %c0_i32, %c0_i32_0 : i32, i32
  }
  func.func @transform_5(%arg0: i32) -> (i32, i32) {
    %c0_i32 = arith.constant 0 : i32
    %c0_i32_0 = arith.constant 0 : i32
    return %c0_i32, %arg0 : i32, i32
  }
}

</mosaic_0001>

<llo_original>
// kernel: slmp_forward.1
$region0: #{slmp_forward.1}
  #allocation0 [shape = 'u32[]', space=smem, size = 0x4, offset = 0x4, fixed_abs, tag = 'smem constant byte address 0x4 - core index']
  #allocation1 [shape = 'u32[144,128]{1,0:T(1,128)}', space=vmem, size = 0x12000, scoped, tag = 'internal scratch']
  #allocation2 [shape = 'f32[1,1]{1,0:T(1,128)S(1)}', space=vmem, size = 0x200, scoped, tag = 'scoped memory for slmp_forward.1']
  %s0 = inlined_call_operand.vmem [shape: f32[128,25], index: 0, kind: input, shape index: {}]
  %s1 = inlined_call_operand.vmem [shape: bf16[64,25], index: 1, kind: input, shape index: {}]
  %s2 = inlined_call_operand.vmem [shape: f32[64,1], index: 2, kind: input, shape index: {}]
  %s3 = inlined_call_operand.vmem [shape: f32[64,1], index: 3, kind: input, shape index: {}]
  %s4 = inlined_call_operand.<no memory space> [shape: f32[1,1], index: 4, kind: input, shape index: {}]
  %s5 = inlined_call_operand.vmem [shape: f32[1,128], index: 5, kind: output, shape index: {}]
  %s6 = sld [smem:[#allocation0]]
  $region30: #{slmp_forward.1} parent=0
    _
  %s8 = ssub.s32 1, %s6
  %s9 = scalar_select 0, %s8, %s6
  %v10 = vstv %s4
  %11 = vst [vmem:[#allocation2] sm:$0x1] %v10
  // Predicated region
  $region2: #{slmp_forward.1} parent=0 // pred_check
    _
  $region3: #{slmp_forward.1} parent=0 // pred_check_branch
    %13 = sbr.rel (0) target = $region5
  $region4: #{slmp_forward.1} parent=0 // pred_region
    _
  $region5: #{slmp_forward.1} parent=0 // pred_fallthru
    _
  // Predicated region
  $region6: #{slmp_forward.1} parent=0 // pred_check
    _
  $region7: #{slmp_forward.1} parent=0 // pred_check_branch
    %15 = sbr.rel (0) target = $region9
  $region8: #{slmp_forward.1} parent=0 // pred_region
    _
  $region9: #{slmp_forward.1} parent=0 // pred_fallthru
    _
  // Predicated region
  $region10: #{slmp_forward.1} parent=0 // pred_check
    _
  $region11: #{slmp_forward.1} parent=0 // pred_check_branch
    %17 = sbr.rel (0) target = $region13
  $region12: #{slmp_forward.1} parent=0 // pred_region
    _
  $region13: #{slmp_forward.1} parent=0 // pred_fallthru
    _
  // Predicated region
  $region14: #{slmp_forward.1} parent=0 // pred_check
    _
  $region15: #{slmp_forward.1} parent=0 // pred_check_branch
    %19 = sbr.rel (0) target = $region17
  $region16: #{slmp_forward.1} parent=0 // pred_region
    _
  $region17: #{slmp_forward.1} parent=0 // pred_fallthru
    _
  // Predicated region
  $region18: #{slmp_forward.1} parent=0 // pred_check
    _
  $region19: #{slmp_forward.1} parent=0 // pred_check_branch
    %21 = sbr.rel (0) target = $region21
  $region20: #{slmp_forward.1} parent=0 // pred_region
    _
  $region21: #{slmp_forward.1} parent=0 // pred_fallthru
    _
  %v23 = vld [vmem:[%s0] sm:$0xff]
  %v24 = vld [vmem:[%s0 + $0x8] sm:$0xff]
  %v25 = vld [vmem:[%s0 + $0x10] sm:$0xff]
  %v26 = vld [vmem:[%s0 + $0x18] sm:$0xff]
  %v27 = vld [vmem:[%s0 + $0x20] sm:$0xff]
  %v28 = vld [vmem:[%s0 + $0x28] sm:$0xff]
  %v29 = vld [vmem:[%s0 + $0x30] sm:$0xff]
  %v30 = vld [vmem:[%s0 + $0x38] sm:$0xff]
  %v31 = vld [vmem:[%s0 + $0x40] sm:$0xff]
  %v32 = vld [vmem:[%s0 + $0x48] sm:$0xff]
  %v33 = vld [vmem:[%s0 + $0x50] sm:$0xff]
  %v34 = vld [vmem:[%s0 + $0x58] sm:$0xff]
  %v35 = vld [vmem:[%s0 + $0x60] sm:$0xff]
  %v36 = vld [vmem:[%s0 + $0x68] sm:$0xff]
  %v37 = vld [vmem:[%s0 + $0x70] sm:$0xff]
  %v38 = vld [vmem:[%s0 + $0x78] sm:$0xff]
  %39 = vxpose.xlu0.b32.start [1/16] %v23, 128
  %40 = vxpose.xlu0.b32.cont [2/16] %v24, 128
  %41 = vxpose.xlu0.b32.cont [3/16] %v25, 128
  %42 = vxpose.xlu0.b32.cont [4/16] %v26, 128
  %43 = vxpose.xlu0.b32.cont [5/16] %v27, 128
  %44 = vxpose.xlu0.b32.cont [6/16] %v28, 128
  %45 = vxpose.xlu0.b32.cont [7/16] %v29, 128
  %46 = vxpose.xlu0.b32.cont [8/16] %v30, 128
  %47 = vxpose.xlu0.b32.cont [9/16] %v31, 128
  %48 = vxpose.xlu0.b32.cont [10/16] %v32, 128
  %49 = vxpose.xlu0.b32.cont [11/16] %v33, 128
  %50 = vxpose.xlu0.b32.cont [12/16] %v34, 128
  %51 = vxpose.xlu0.b32.cont [13/16] %v35, 128
  %52 = vxpose.xlu0.b32.cont [14/16] %v36, 128
  %53 = vxpose.xlu0.b32.cont [15/16] %v37, 128
  %54 = vxpose.xlu0.b32.end [16/16] %v38, 128
  %v55 = vpop.trf.xlu0
  %v56 = vpop.trf.xlu0
  %v57 = vpop.trf.xlu0
  %v58 = vpop.trf.xlu0
  %v59 = vpop.trf.xlu0
  %v60 = vpop.trf.xlu0
  %v61 = vpop.trf.xlu0
  %v62 = vpop.trf.xlu0
  %v63 = vpop.trf.xlu0
  %v64 = vpop.trf.xlu0
  %v65 = vpop.trf.xlu0
  %v66 = vpop.trf.xlu0
  %v67 = vpop.trf.xlu0
  %v68 = vpop.trf.xlu0
  %v69 = vpop.trf.xlu0
  %v70 = vpop.trf.xlu0
  %v71 = vpack.c.bf16 %v56, %v55
  %v72 = vpack.c.bf16 %v58, %v57
  %v73 = vld [vmem:[%s1] sm:$0xf]
  %v74 = vld [vmem:[%s1 + $0x4] sm:$0xf]
  %v75 = vld [vmem:[%s1 + $0x8] sm:$0xf]
  %v76 = vld [vmem:[%s1 + $0xc] sm:$0xf]
  %v77 = vld [vmem:[%s1 + $0x10] sm:$0xf]
  %v78 = vld [vmem:[%s1 + $0x14] sm:$0xf]
  %v79 = vld [vmem:[%s1 + $0x18] sm:$0xf]
  %v80 = vld [vmem:[%s1 + $0x1c] sm:$0xf]
  %v81 = vld [vmem:[%s2] sm:$0xff]
  %v82 = vld [vmem:[%s2 + $0x8] sm:$0xff]
  %v83 = vld [vmem:[%s2 + $0x10] sm:$0xff]
  %v84 = vld [vmem:[%s2 + $0x18] sm:$0xff]
  %v85 = vld [vmem:[%s2 + $0x20] sm:$0xff]
  %v86 = vld [vmem:[%s2 + $0x28] sm:$0xff]
  %v87 = vld [vmem:[%s2 + $0x30] sm:$0xff]
  %v88 = vld [vmem:[%s2 + $0x38] sm:$0xff]
  %90 = vset.pattern.permute.xlu0 0
  %91 = vperm.xlu0 %90, %v81
  %v92 = vpop.permute.xlu0 %91
  %95 = vset.pattern.permute.xlu0 0
  %96 = vperm.xlu0 %95, %v82
  %v97 = vpop.permute.xlu0 %96
  %100 = vset.pattern.permute.xlu0 0
  %101 = vperm.xlu0 %100, %v83
  %v102 = vpop.permute.xlu0 %101
  %105 = vset.pattern.permute.xlu0 0
  %106 = vperm.xlu0 %105, %v84
  %v107 = vpop.permute.xlu0 %106
  %110 = vset.pattern.permute.xlu0 0
  %111 = vperm.xlu0 %110, %v85
  %v112 = vpop.permute.xlu0 %111
  %115 = vset.pattern.permute.xlu0 0
  %116 = vperm.xlu0 %115, %v86
  %v117 = vpop.permute.xlu0 %116
  %120 = vset.pattern.permute.xlu0 0
  %121 = vperm.xlu0 %120, %v87
  %v122 = vpop.permute.xlu0 %121
  %125 = vset.pattern.permute.xlu0 0
  %126 = vperm.xlu0 %125, %v88
  %v127 = vpop.permute.xlu0 %126
  %v137 = vunpack.c.l.b16 %v73
  %v138 = vunpack.c.l.b16 %v74
  %v139 = vunpack.c.l.b16 %v75
  %v140 = vunpack.c.l.b16 %v76
  %v141 = vunpack.c.l.b16 %v77
  %v142 = vunpack.c.l.b16 %v78
  %v143 = vunpack.c.l.b16 %v79
  %v144 = vunpack.c.l.b16 %v80
  %v145 = vpack.c.b16 %v138, %v137
  %v146 = vpack.c.b16 %v140, %v139
  %v147 = vpack.c.b16 %v142, %v141
  %v148 = vpack.c.b16 %v144, %v143
  %vm149 = vcmask 203776
  %v151 = vsel %vm149, %v145, 0
  %v154 = vsel %vm149, %v146, 0
  %v157 = vsel %vm149, %v147, 0
  %v160 = vsel %vm149, %v148, 0
  %vm162 = vcmask 1043456
  %vm163 = vcmask 1044480
  %v164 = vsel %vm162, 4294967295, 65535
  %v165 = vsel %vm163, %v164, 0
  %v167 = vand.u32 %v72, %v165
  %169 = vmatprep.subr.bf16.mxu0 0
  %170 = vmatpush1.bf16.msra.mxu0 %v71
  %171 = vmatprep.subr.bf16.mxu0 0
  %172 = vmatpush1.bf16.msra.mxu0 %v167
  %173 = vmatprep.subr.bf16.mxu0 0
  %174 = vmatpush1.bf16.msra.mxu0 0
  %175 = vmatprep.subr.bf16.mxu0 0
  %176 = vmatpush1.bf16.msra.mxu0 0
  %177 = vmatprep.subr.bf16.mxu0 0
  %178 = vmatpush1.bf16.msra.mxu0 0
  %179 = vmatprep.subr.bf16.mxu0 0
  %180 = vmatpush1.bf16.msra.mxu0 0
  %181 = vmatprep.subr.bf16.mxu0 0
  %182 = vmatpush1.bf16.msra.mxu0 0
  %183 = vmatprep.subr.bf16.mxu0 0
  %184 = vmatpush1.bf16.msra.mxu0 0
  %185 = vmatprep.subr.bf16.mxu0 0
  %186 = vmatpush1.bf16.msra.mxu0 0
  %187 = vmatprep.subr.bf16.mxu0 0
  %188 = vmatpush1.bf16.msra.mxu0 0
  %189 = vmatprep.subr.bf16.mxu0 0
  %190 = vmatpush1.bf16.msra.mxu0 0
  %191 = vmatprep.subr.bf16.mxu0 0
  %192 = vmatpush1.bf16.msra.mxu0 0
  %193 = vmatprep.subr.bf16.mxu0 0
  %194 = vmatpush1.bf16.msra.mxu0 0
  %195 = vmatprep.subr.bf16.mxu0 0
  %196 = vmatpush1.bf16.msra.mxu0 0
  %197 = vmatprep.subr.bf16.mxu0 0
  %198 = vmatpush1.bf16.msra.mxu0 0
  %199 = vmatprep.subr.bf16.mxu0 0
  %200 = vmatpush1.bf16.msra.mxu0 0
  %201 = vmatprep.mubr.bf16.mxu0 0
  %202 = vmatmul.mubr.bf16.gmra.mrb[0].mxu0 %v151
  %v203 = vpop.f32.mrb[0].mxu0
  %v204 = vadd.f32 %v92, %v203
  %v205 = vpop.f32.mrb[0].mxu0
  %v206 = vpop.f32.mrb[0].mxu0
  %v207 = vadd.f32 %v97, %v206
  %v208 = vpop.f32.mrb[0].mxu0
  %209 = vmatprep.mubr.bf16.mxu0 0
  %210 = vmatmul.mubr.bf16.gmra.mrb[0].mxu0 %v154
  %v211 = vpop.f32.mrb[0].mxu0
  %v212 = vadd.f32 %v102, %v211
  %v213 = vpop.f32.mrb[0].mxu0
  %v214 = vpop.f32.mrb[0].mxu0
  %v215 = vadd.f32 %v107, %v214
  %v216 = vpop.f32.mrb[0].mxu0
  %217 = vmatprep.mubr.bf16.mxu0 0
  %218 = vmatmul.mubr.bf16.gmra.mrb[0].mxu0 %v157
  %v219 = vpop.f32.mrb[0].mxu0
  %v220 = vadd.f32 %v112, %v219
  %v221 = vpop.f32.mrb[0].mxu0
  %v222 = vpop.f32.mrb[0].mxu0
  %v223 = vadd.f32 %v117, %v222
  %v224 = vpop.f32.mrb[0].mxu0
  %225 = vmatprep.mubr.bf16.mxu0 0
  %226 = vmatmul.mubr.bf16.gmra.mrb[0].mxu0 %v160
  %v227 = vpop.f32.mrb[0].mxu0
  %v228 = vadd.f32 %v122, %v227
  %v229 = vpop.f32.mrb[0].mxu0
  %v230 = vpop.f32.mrb[0].mxu0
  %v231 = vadd.f32 %v127, %v230
  %v232 = vpop.f32.mrb[0].mxu0
  %233 = vdwg.mxu0
  %v234 = vmax.f32 %v204, 0.0
  %v235 = vmax.f32 %v207, 0.0
  %v236 = vmax.f32 %v212, 0.0
  %v237 = vmax.f32 %v215, 0.0
  %v238 = vmax.f32 %v220, 0.0
  %v239 = vmax.f32 %v223, 0.0
  %v240 = vmax.f32 %v228, 0.0
  %v241 = vmax.f32 %v231, 0.0
  %v242 = vld [vmem:[%s3] sm:$0xff]
  %v243 = vld [vmem:[%s3 + $0x8] sm:$0xff]
  %v244 = vld [vmem:[%s3 + $0x10] sm:$0xff]
  %v245 = vld [vmem:[%s3 + $0x18] sm:$0xff]
  %v246 = vld [vmem:[%s3 + $0x20] sm:$0xff]
  %v247 = vld [vmem:[%s3 + $0x28] sm:$0xff]
  %v248 = vld [vmem:[%s3 + $0x30] sm:$0xff]
  %v249 = vld [vmem:[%s3 + $0x38] sm:$0xff]
  %251 = vset.pattern.permute.xlu0 0
  %252 = vperm.xlu0 %251, %v242
  %v253 = vpop.permute.xlu0 %252
  %256 = vset.pattern.permute.xlu0 0
  %257 = vperm.xlu0 %256, %v243
  %v258 = vpop.permute.xlu0 %257
  %261 = vset.pattern.permute.xlu0 0
  %262 = vperm.xlu0 %261, %v244
  %v263 = vpop.permute.xlu0 %262
  %266 = vset.pattern.permute.xlu0 0
  %267 = vperm.xlu0 %266, %v245
  %v268 = vpop.permute.xlu0 %267
  %271 = vset.pattern.permute.xlu0 0
  %272 = vperm.xlu0 %271, %v246
  %v273 = vpop.permute.xlu0 %272
  %276 = vset.pattern.permute.xlu0 0
  %277 = vperm.xlu0 %276, %v247
  %v278 = vpop.permute.xlu0 %277
  %281 = vset.pattern.permute.xlu0 0
  %282 = vperm.xlu0 %281, %v248
  %v283 = vpop.permute.xlu0 %282
  %286 = vset.pattern.permute.xlu0 0
  %287 = vperm.xlu0 %286, %v249
  %v288 = vpop.permute.xlu0 %287
  %v290 = vmul.f32 %v234, %v253
  %v291 = vmul.f32 %v235, %v258
  %v292 = vmul.f32 %v236, %v263
  %v293 = vmul.f32 %v237, %v268
  %v294 = vmul.f32 %v238, %v273
  %v295 = vmul.f32 %v239, %v278
  %v296 = vmul.f32 %v240, %v283
  %v297 = vmul.f32 %v241, %v288
  %v298 = vadd.f32 %v290, %v291
  %v299 = vadd.f32 %v298, %v292
  %v300 = vadd.f32 %v299, %v293
  %v301 = vadd.f32 %v300, %v294
  %v302 = vadd.f32 %v301, %v295
  %v303 = vadd.f32 %v302, %v296
  %v304 = vadd.f32 %v303, %v297
  %v305 = vrot.slane %v304, 4
  %v306 = vadd.f32 %v304, %v305
  %v307 = vrot.slane %v306, 2
  %v308 = vadd.f32 %v306, %v307
  %v309 = vrot.slane %v308, 1
  %v310 = vadd.f32 %v308, %v309
  %v311 = vld [vmem:[#allocation2] sm:$0x1]
  %313 = vset.pattern.permute.xlu0 0
  %314 = vperm.xlu0 %313, %v311
  %v315 = vpop.permute.xlu0 %314
  %v317 = vlaneseq
  %v318 = vshrl.u32 %v317, 7
  %v319 = vsub.s32 0, %v318
  %v320 = vrot.slane %v315, %v319
  %v321 = vadd.f32 %v310, %v320
  %v322 = vsub.f32 0.0, %v321
  %v323 = vmul.f32 %v322, 1.442695
  %v324 = vpow.pop %v323
  %v325 = vadd.f32 %v324, 1.0
  %v326 = vrcp.pop %v325
  %v327 = vmul.f32 1.0, %v326
  %328 = vst [vmem:[%s5] sm:$0x1] %v327
  // Predicated region
  $region22: #{slmp_forward.1} parent=0 // pred_check
    _
  $region23: #{slmp_forward.1} parent=0 // pred_check_branch
    %330 = sbr.rel (0) target = $region25
  $region24: #{slmp_forward.1} parent=0 // pred_region
    _
  $region25: #{slmp_forward.1} parent=0 // pred_fallthru
    _
  // Predicated region
  $region26: #{slmp_forward.1} parent=0 // pred_check
    _
  $region27: #{slmp_forward.1} parent=0 // pred_check_branch
    %332 = sbr.rel (0) target = $region29
  $region28: #{slmp_forward.1} parent=0 // pred_region
    _
  $region29: #{slmp_forward.1} parent=0 // pred_fallthru
    _

</llo_original>
